<compile_context>
chip_gen: v5e
topology: v5e:2x2
jax: 0.10.0
libtpu: 0.0.40
codegen_flags: <defaults>
</compile_context>

<pallas_src>
import jax
import jax.numpy as jnp
from jax.experimental import pallas as pl
from jax.experimental.pallas import tpu as pltpu

HIGHEST = jax.lax.Precision.HIGHEST

# Row-grid constants for the large-batch path (sized so 2 inputs x 2 buffers + output
# double-buffer stays far under v7x's 32 MiB scoped VMEM default; ~512 B/row padded f32).
_TILE_B = 512
_GRID_MIN_BATCH = 1024


# ------------------------------------------------------------------ kernel ---
def nets_fused_kernel(xaug_ref, w_ref, out_ref):
    # Single fused dot: [x_hat | x_next | pad] = x_aug @ W_full  (bias folded in W_full).
    out_ref[...] = jnp.dot(
        xaug_ref[...], w_ref[...],
        preferred_element_type=jnp.float32,
        precision=HIGHEST,
    ).astype(out_ref.dtype)


# --------------------------------------------------------------- param prep ---
def init_params(key, en0, en1, en2, en3, b0):
    """Deterministic PyTorch-Linear-style init; weights stored as (in, out)."""
    dims = [
        (en0, en1), (en1, en2), (en2, en3),   # encoder
        (en3, en3), (b0, en3),                # A, B
        (en3, en2), (en2, en1), (en1, en0),   # decoder
    ]
    params = []
    for i, (din, dout) in enumerate(dims):
        kw, kb = jax.random.split(jax.random.fold_in(key, i))
        bound = 1.0 / (din ** 0.5)
        w = jax.random.uniform(kw, (din, dout), jnp.float32, -bound, bound)
        b = jax.random.uniform(kb, (1, dout), jnp.float32, -bound, bound)
        params.append((w, b))
    return params


def fuse_params(params, T, dtype=jnp.float32, lane=128):
    """Fold the whole forward into ONE affine map.

    Returns W_full of shape (en0 + T*b0 + 1, N_pad) with N_pad = ceil(2*en0/128)*128.
      rows [0, en0)            : x contribution to [x_hat | x_next]
      rows [en0, en0+T*b0)     : u_t contributions (zero block for x_hat half)
      last row                 : all fused biases (paired with a ones input column)
    Exact up to f32 rounding (all folds at HIGHEST precision). Run ONCE per param update.
    """
    (we1, be1), (we2, be2), (we3, be3), (wA, bA), (wB, bB), \
        (wd1, bd1), (wd2, bd2), (wd3, bd3) = params

    def dot(a, b):
        return jnp.dot(a, b, precision=HIGHEST)

    def chain(layers):
        W, b = layers[0]
        for Wn, bn in layers[1:]:
            W = dot(W, Wn)
            b = dot(b, Wn) + bn
        return W, b

    W_enc, b_enc = chain([(we1, be1), (we2, be2), (we3, be3)])   # (en0, en3), (1, en3)
    W_dec, b_dec = chain([(wd1, bd1), (wd2, bd2), (wd3, bd3)])   # (en3, en0), (1, en0)

    en0 = we1.shape[0]
    en3 = wA.shape[0]
    b0 = wB.shape[0]
    c = bA + bB                                                  # per-step fused bias

    # Row-vector rollout: z_T = z @ wA^T + sum_t u_t @ (wB wA^{T-1-t}) + sum_k c wA^k
    P = [jnp.eye(en3, dtype=dtype)]                              # P[k] = wA^k
    for _ in range(T):
        P.append(dot(P[-1], wA))

    b_roll = jnp.zeros((1, en3), dtype)
    for k in range(T):
        b_roll = b_roll + dot(c, P[k])

    # x rows: [W_enc W_dec | W_enc wA^T W_dec]
    rows_x = jnp.concatenate([dot(W_enc, W_dec), dot(dot(W_enc, P[T]), W_dec)], axis=1)

    # u_t rows: [0 | wB wA^{T-1-t} W_dec]
    zero_u = jnp.zeros((b0, en0), dtype)
    rows_u = jnp.concatenate(
        [jnp.concatenate([zero_u, dot(dot(wB, P[T - 1 - t]), W_dec)], axis=1)
         for t in range(T)], axis=0)                             # (T*b0, 2*en0)

    # bias row (pairs with the ones column appended to the input)
    b_hat = dot(b_enc, W_dec) + b_dec
    b_nxt = dot(dot(b_enc, P[T]) + b_roll, W_dec) + b_dec
    row_b = jnp.concatenate([b_hat, b_nxt], axis=1)              # (1, 2*en0)

    W_full = jnp.concatenate([rows_x, rows_u, row_b], axis=0)    # (en0+T*b0+1, 2*en0)

    # Pad output width to a multiple of 128 lanes -> unmasked vst writeback.
    n_out = 2 * en0
    n_pad = ((n_out + lane - 1) // lane) * lane
    if n_pad > n_out:
        W_full = jnp.pad(W_full, ((0, 0), (0, n_pad - n_out)))
    return W_full


# ----------------------------------------------------------------- wrapper ---
@jax.jit
def nets_forward(x, u_stack, w_full):
    """x: (batch, en0), u_stack: (T, batch, b0), w_full: precomputed by fuse_params."""
    T, batch, b0 = u_stack.shape
    en0 = x.shape[1]
    K, N_pad = w_full.shape

    u_flat = jnp.transpose(u_stack, (1, 0, 2)).reshape(batch, T * b0)
    ones = jnp.ones((batch, 1), x.dtype)
    x_aug = jnp.concatenate([x, u_flat, ones], axis=1)           # (batch, en0+T*b0+1)

    cost = pl.CostEstimate(
        flops=2 * batch * K * N_pad,
        transcendentals=0,
        bytes_accessed=4 * (batch * K + K * N_pad + batch * N_pad),
    )

    if batch >= _GRID_MIN_BATCH and batch % _TILE_B == 0:
        # Large batch: row grid -> software-pipelined HBM DMAs, and the 'parallel'
        # axis lets Mosaic shard row tiles across v7x's two TensorCores.
        out = pl.pallas_call(
            nets_fused_kernel,
            out_shape=jax.ShapeDtypeStruct((batch, N_pad), x.dtype),
            grid=(batch // _TILE_B,),
            in_specs=[
                pl.BlockSpec((_TILE_B, K), lambda i: (i, 0)),
                pl.BlockSpec((K, N_pad), lambda i: (0, 0)),      # weight stays resident
            ],
            out_specs=pl.BlockSpec((_TILE_B, N_pad), lambda i: (i, 0)),
            compiler_params=pltpu.CompilerParams(
                dimension_semantics=("parallel",)),
            cost_estimate=cost,
        )(x_aug, w_full)
        # TODO(synk): pad the batch to a multiple of _TILE_B instead of falling back
        # when batch is large but not divisible.
    else:
        # Small batch: single VMEM-resident block; grid-step overhead would dominate.
        vmem = pl.BlockSpec(memory_space=pltpu.MemorySpace.VMEM)
        out = pl.pallas_call(
            nets_fused_kernel,
            out_shape=jax.ShapeDtypeStruct((batch, N_pad), x.dtype),
            in_specs=[vmem, vmem],
            out_specs=vmem,
            cost_estimate=cost,
        )(x_aug, w_full)

    return out[:, :en0], out[:, en0:2 * en0]                     # x_hat, x_next


# -------------------------------------------------------------------- main ---
if __name__ == "__main__":
    # Small shapes consistent with the module: en0=50 state dim, b0=5 control dim, T=2.
    en0, en1, en2, en3, b0 = 50, 40, 30, 20, 5
    batch, T = 8, 2

    key = jax.random.PRNGKey(0)
    kx, ku, kp = jax.random.split(key, 3)
    x = jax.random.uniform(kx, (batch, en0), dtype=jnp.float32)
    u_stack = jax.random.uniform(ku, (T, batch, b0), dtype=jnp.float32)  # U_set stacked
    params = init_params(kp, en0, en1, en2, en3, b0)

    # Hoisted: fused weight computed once per parameter update, reused every call.
    w_full = jax.block_until_ready(fuse_params(params, T))

    x_hat, x_next = nets_forward(x, u_stack, w_full)
    jax.block_until_ready((x_hat, x_next))

    # Pure-JAX unfused reference (matches the PyTorch module's forward).
    def lin(h, w, b):
        return jnp.dot(h, w, precision=HIGHEST) + b

    z = lin(lin(lin(x, *params[0]), *params[1]), *params[2])
    dec = lambda h: lin(lin(lin(h, *params[5]), *params[6]), *params[7])
    ref_hat = dec(z)
    zn = z
    for t in range(T):
        zn = lin(zn, *params[3]) + lin(u_stack[t], *params[4])
    ref_next = dec(zn)

    assert jnp.allclose(x_hat, ref_hat, atol=1e-4, rtol=1e-4)
    assert jnp.allclose(x_next, ref_next, atol=1e-4, rtol=1e-4)
    print("KERNEL_OK")
</pallas_src>

<mosaic_0001>
module attributes {stable_mosaic.version = 11 : i64} {
  func.func @nets_fused_kernel(%arg0: memref<8x61xf32, #tpu.memory_space<vmem>>, %arg1: memref<61x128xf32, #tpu.memory_space<vmem>>, %arg2: memref<8x128xf32, #tpu.memory_space<vmem>>) attributes {dimension_semantics = [], scalar_prefetch = 0 : i64, scratch_operands = 0 : i64, tpu.core_type = #tpu.core_type<tc>} {
    %c0 = arith.constant 0 : index
    %c0_0 = arith.constant 0 : index
    %0 = vector.load %arg0[%c0, %c0_0] : memref<8x61xf32, #tpu.memory_space<vmem>>, vector<8x61xf32>
    %c0_1 = arith.constant 0 : index
    %c0_2 = arith.constant 0 : index
    %1 = vector.load %arg1[%c0_1, %c0_2] : memref<61x128xf32, #tpu.memory_space<vmem>>, vector<61x128xf32>
    %cst = arith.constant dense<0.000000e+00> : vector<8x128xf32>
    %2 = tpu.matmul %0, %1, %cst {dimension_numbers = #tpu.dot_dimension_numbers<[1], [0], [0], [1], [0, 0, 1, 1], [], []>, precision = #tpu.contract_precision<fp32>} : vector<8x61xf32>, vector<61x128xf32>, vector<8x128xf32> -> vector<8x128xf32>
    %c0_3 = arith.constant 0 : index
    %c0_4 = arith.constant 0 : index
    %3 = vector.load %arg2[%c0_3, %c0_4] : memref<8x128xf32, #tpu.memory_space<vmem>>, vector<8x128xf32>
    tpu.vector_store %arg2[%c0_3, %c0_4], %2 {strides = array<i32>} : memref<8x128xf32, #tpu.memory_space<vmem>>, vector<8x128xf32>,
    return
  }
}

</mosaic_0001>

<llo_original>
// kernel: nets_forward.1
$region0: #{nets_forward.1}
  #allocation0 [shape = 'u32[]', space=smem, size = 0x4, offset = 0x4, fixed_abs, tag = 'smem constant byte address 0x4 - core index']
  #allocation1 [shape = 'u32[72,128]{1,0:T(1,128)}', space=vmem, size = 0x9000, scoped, tag = 'internal scratch']
  %s0 = inlined_call_operand.vmem [shape: f32[8,61], index: 0, kind: input, shape index: {}]
  %s1 = inlined_call_operand.vmem [shape: f32[61,128], index: 1, kind: input, shape index: {}]
  %s2 = inlined_call_operand.vmem [shape: f32[8,128], index: 2, kind: output, shape index: {}]
  %s3 = sld [smem:[#allocation0]]
  $region18: #{nets_forward.1} parent=0
    _
  %s5 = ssub.s32 1, %s3
  %s6 = scalar_select 0, %s5, %s3
  // Predicated region
  $region2: #{nets_forward.1} parent=0 // pred_check
    _
  $region3: #{nets_forward.1} parent=0 // pred_check_branch
    %8 = sbr.rel (0) target = $region5
  $region4: #{nets_forward.1} parent=0 // pred_region
    _
  $region5: #{nets_forward.1} parent=0 // pred_fallthru
    _
  // Predicated region
  $region6: #{nets_forward.1} parent=0 // pred_check
    _
  $region7: #{nets_forward.1} parent=0 // pred_check_branch
    %10 = sbr.rel (0) target = $region9
  $region8: #{nets_forward.1} parent=0 // pred_region
    _
  $region9: #{nets_forward.1} parent=0 // pred_fallthru
    _
  %v11 = vld [vmem:[%s0] sm:$0xff]
  %v12 = vld [vmem:[%s1] sm:$0xff]
  %v13 = vld [vmem:[%s1 + $0x8] sm:$0xff]
  %v14 = vld [vmem:[%s1 + $0x10] sm:$0xff]
  %v15 = vld [vmem:[%s1 + $0x18] sm:$0xff]
  %v16 = vld [vmem:[%s1 + $0x20] sm:$0xff]
  %v17 = vld [vmem:[%s1 + $0x28] sm:$0xff]
  %v18 = vld [vmem:[%s1 + $0x30] sm:$0xff]
  %v19 = vld [vmem:[%s1 + $0x38] sm:$0x1f]
  %vm20 = vcmask 498688
  %v22 = vsel %vm20, %v11, 0
  %vm24 = vcmask 1044480
  %v26 = vsel %vm24, %v19, 0
  %28 = vmatpush.msra.mxu0 0.0
  %29 = vmatpush.msra.mxu0 0.0
  %30 = vmatpush.msra.mxu0 0.0
  %31 = vmatpush.msra.mxu0 0.0
  %32 = vmatpush.msra.mxu0 0.0
  %33 = vmatpush.msra.mxu0 0.0
  %34 = vmatpush.msra.mxu0 0.0
  %35 = vmatpush.msra.mxu0 0.0
  %v36 = vand.u32 %v26, 4294901760
  %37 = vmatpush.msra.mxu0 %v36
  %v38 = vand.u32 %v18, 4294901760
  %39 = vmatpush.msra.mxu0 %v38
  %v40 = vand.u32 %v17, 4294901760
  %41 = vmatpush.msra.mxu0 %v40
  %v42 = vand.u32 %v16, 4294901760
  %43 = vmatpush.msra.mxu0 %v42
  %v44 = vand.u32 %v15, 4294901760
  %45 = vmatpush.msra.mxu0 %v44
  %v46 = vand.u32 %v14, 4294901760
  %47 = vmatpush.msra.mxu0 %v46
  %v48 = vand.u32 %v13, 4294901760
  %49 = vmatpush.msra.mxu0 %v48
  %v50 = vand.u32 %v12, 4294901760
  %51 = vmatpush.msra.mxu0 %v50
  %v52 = vand.u32 %v22, 4294901760
  %v53 = vsub.f32 %v22, %v52
  %v54 = vand.u32 %v53, 4294901760
  %v55 = vsub.f32 %v53, %v54
  %v56 = vand.u32 %v55, 4294901760
  %57 = vmatmul.f32.gmra.mxu0 %v56
  %v58 = vpop.f32.mrf.mxu0
  %v59 = vadd.f32 0.0, %v58
  %60 = vdwg.mxu0
  %61 = vmatpush.msra.mxu0 0.0
  %62 = vmatpush.msra.mxu0 0.0
  %63 = vmatpush.msra.mxu0 0.0
  %64 = vmatpush.msra.mxu0 0.0
  %65 = vmatpush.msra.mxu0 0.0
  %66 = vmatpush.msra.mxu0 0.0
  %67 = vmatpush.msra.mxu0 0.0
  %68 = vmatpush.msra.mxu0 0.0
  %v69 = vand.u32 %v26, 4294901760
  %v70 = vsub.f32 %v26, %v69
  %v71 = vand.u32 %v70, 4294901760
  %v72 = vsub.f32 %v70, %v71
  %v73 = vand.u32 %v72, 4294901760
  %74 = vmatpush.msra.mxu0 %v73
  %v75 = vand.u32 %v18, 4294901760
  %v76 = vsub.f32 %v18, %v75
  %v77 = vand.u32 %v76, 4294901760
  %v78 = vsub.f32 %v76, %v77
  %v79 = vand.u32 %v78, 4294901760
  %80 = vmatpush.msra.mxu0 %v79
  %v81 = vand.u32 %v17, 4294901760
  %v82 = vsub.f32 %v17, %v81
  %v83 = vand.u32 %v82, 4294901760
  %v84 = vsub.f32 %v82, %v83
  %v85 = vand.u32 %v84, 4294901760
  %86 = vmatpush.msra.mxu0 %v85
  %v87 = vand.u32 %v16, 4294901760
  %v88 = vsub.f32 %v16, %v87
  %v89 = vand.u32 %v88, 4294901760
  %v90 = vsub.f32 %v88, %v89
  %v91 = vand.u32 %v90, 4294901760
  %92 = vmatpush.msra.mxu0 %v91
  %v93 = vand.u32 %v15, 4294901760
  %v94 = vsub.f32 %v15, %v93
  %v95 = vand.u32 %v94, 4294901760
  %v96 = vsub.f32 %v94, %v95
  %v97 = vand.u32 %v96, 4294901760
  %98 = vmatpush.msra.mxu0 %v97
  %v99 = vand.u32 %v14, 4294901760
  %v100 = vsub.f32 %v14, %v99
  %v101 = vand.u32 %v100, 4294901760
  %v102 = vsub.f32 %v100, %v101
  %v103 = vand.u32 %v102, 4294901760
  %104 = vmatpush.msra.mxu0 %v103
  %v105 = vand.u32 %v13, 4294901760
  %v106 = vsub.f32 %v13, %v105
  %v107 = vand.u32 %v106, 4294901760
  %v108 = vsub.f32 %v106, %v107
  %v109 = vand.u32 %v108, 4294901760
  %110 = vmatpush.msra.mxu0 %v109
  %v111 = vand.u32 %v12, 4294901760
  %v112 = vsub.f32 %v12, %v111
  %v113 = vand.u32 %v112, 4294901760
  %v114 = vsub.f32 %v112, %v113
  %v115 = vand.u32 %v114, 4294901760
  %116 = vmatpush.msra.mxu0 %v115
  %v117 = vand.u32 %v22, 4294901760
  %118 = vmatmul.f32.gmra.mxu0 %v117
  %v119 = vpop.f32.mrf.mxu0
  %v120 = vadd.f32 %v59, %v119
  %121 = vdwg.mxu0
  %122 = vmatpush.msra.mxu0 0.0
  %123 = vmatpush.msra.mxu0 0.0
  %124 = vmatpush.msra.mxu0 0.0
  %125 = vmatpush.msra.mxu0 0.0
  %126 = vmatpush.msra.mxu0 0.0
  %127 = vmatpush.msra.mxu0 0.0
  %128 = vmatpush.msra.mxu0 0.0
  %129 = vmatpush.msra.mxu0 0.0
  %v130 = vand.u32 %v26, 4294901760
  %v131 = vsub.f32 %v26, %v130
  %132 = vmatpush.msra.mxu0 %v131
  %v133 = vand.u32 %v18, 4294901760
  %v134 = vsub.f32 %v18, %v133
  %135 = vmatpush.msra.mxu0 %v134
  %v136 = vand.u32 %v17, 4294901760
  %v137 = vsub.f32 %v17, %v136
  %138 = vmatpush.msra.mxu0 %v137
  %v139 = vand.u32 %v16, 4294901760
  %v140 = vsub.f32 %v16, %v139
  %141 = vmatpush.msra.mxu0 %v140
  %v142 = vand.u32 %v15, 4294901760
  %v143 = vsub.f32 %v15, %v142
  %144 = vmatpush.msra.mxu0 %v143
  %v145 = vand.u32 %v14, 4294901760
  %v146 = vsub.f32 %v14, %v145
  %147 = vmatpush.msra.mxu0 %v146
  %v148 = vand.u32 %v13, 4294901760
  %v149 = vsub.f32 %v13, %v148
  %150 = vmatpush.msra.mxu0 %v149
  %v151 = vand.u32 %v12, 4294901760
  %v152 = vsub.f32 %v12, %v151
  %153 = vmatpush.msra.mxu0 %v152
  %v154 = vand.u32 %v22, 4294901760
  %v155 = vsub.f32 %v22, %v154
  %156 = vmatmul.f32.gmra.mxu0 %v155
  %v157 = vpop.f32.mrf.mxu0
  %v158 = vadd.f32 %v120, %v157
  %159 = vdwg.mxu0
  %160 = vmatpush.msra.mxu0 0.0
  %161 = vmatpush.msra.mxu0 0.0
  %162 = vmatpush.msra.mxu0 0.0
  %163 = vmatpush.msra.mxu0 0.0
  %164 = vmatpush.msra.mxu0 0.0
  %165 = vmatpush.msra.mxu0 0.0
  %166 = vmatpush.msra.mxu0 0.0
  %167 = vmatpush.msra.mxu0 0.0
  %v168 = vand.u32 %v26, 4294901760
  %169 = vmatpush.msra.mxu0 %v168
  %v170 = vand.u32 %v18, 4294901760
  %171 = vmatpush.msra.mxu0 %v170
  %v172 = vand.u32 %v17, 4294901760
  %173 = vmatpush.msra.mxu0 %v172
  %v174 = vand.u32 %v16, 4294901760
  %175 = vmatpush.msra.mxu0 %v174
  %v176 = vand.u32 %v15, 4294901760
  %177 = vmatpush.msra.mxu0 %v176
  %v178 = vand.u32 %v14, 4294901760
  %179 = vmatpush.msra.mxu0 %v178
  %v180 = vand.u32 %v13, 4294901760
  %181 = vmatpush.msra.mxu0 %v180
  %v182 = vand.u32 %v12, 4294901760
  %183 = vmatpush.msra.mxu0 %v182
  %v184 = vand.u32 %v22, 4294901760
  %v185 = vsub.f32 %v22, %v184
  %v186 = vand.u32 %v185, 4294901760
  %187 = vmatmul.f32.gmra.mxu0 %v186
  %v188 = vpop.f32.mrf.mxu0
  %v189 = vadd.f32 %v158, %v188
  %190 = vdwg.mxu0
  %191 = vmatpush.msra.mxu0 0.0
  %192 = vmatpush.msra.mxu0 0.0
  %193 = vmatpush.msra.mxu0 0.0
  %194 = vmatpush.msra.mxu0 0.0
  %195 = vmatpush.msra.mxu0 0.0
  %196 = vmatpush.msra.mxu0 0.0
  %197 = vmatpush.msra.mxu0 0.0
  %198 = vmatpush.msra.mxu0 0.0
  %v199 = vand.u32 %v26, 4294901760
  %v200 = vsub.f32 %v26, %v199
  %v201 = vand.u32 %v200, 4294901760
  %202 = vmatpush.msra.mxu0 %v201
  %v203 = vand.u32 %v18, 4294901760
  %v204 = vsub.f32 %v18, %v203
  %v205 = vand.u32 %v204, 4294901760
  %206 = vmatpush.msra.mxu0 %v205
  %v207 = vand.u32 %v17, 4294901760
  %v208 = vsub.f32 %v17, %v207
  %v209 = vand.u32 %v208, 4294901760
  %210 = vmatpush.msra.mxu0 %v209
  %v211 = vand.u32 %v16, 4294901760
  %v212 = vsub.f32 %v16, %v211
  %v213 = vand.u32 %v212, 4294901760
  %214 = vmatpush.msra.mxu0 %v213
  %v215 = vand.u32 %v15, 4294901760
  %v216 = vsub.f32 %v15, %v215
  %v217 = vand.u32 %v216, 4294901760
  %218 = vmatpush.msra.mxu0 %v217
  %v219 = vand.u32 %v14, 4294901760
  %v220 = vsub.f32 %v14, %v219
  %v221 = vand.u32 %v220, 4294901760
  %222 = vmatpush.msra.mxu0 %v221
  %v223 = vand.u32 %v13, 4294901760
  %v224 = vsub.f32 %v13, %v223
  %v225 = vand.u32 %v224, 4294901760
  %226 = vmatpush.msra.mxu0 %v225
  %v227 = vand.u32 %v12, 4294901760
  %v228 = vsub.f32 %v12, %v227
  %v229 = vand.u32 %v228, 4294901760
  %230 = vmatpush.msra.mxu0 %v229
  %v231 = vand.u32 %v22, 4294901760
  %232 = vmatmul.f32.gmra.mxu0 %v231
  %v233 = vpop.f32.mrf.mxu0
  %v234 = vadd.f32 %v189, %v233
  %235 = vdwg.mxu0
  %236 = vmatpush.msra.mxu0 0.0
  %237 = vmatpush.msra.mxu0 0.0
  %238 = vmatpush.msra.mxu0 0.0
  %239 = vmatpush.msra.mxu0 0.0
  %240 = vmatpush.msra.mxu0 0.0
  %241 = vmatpush.msra.mxu0 0.0
  %242 = vmatpush.msra.mxu0 0.0
  %243 = vmatpush.msra.mxu0 0.0
  %v244 = vand.u32 %v26, 4294901760
  %245 = vmatpush.msra.mxu0 %v244
  %v246 = vand.u32 %v18, 4294901760
  %247 = vmatpush.msra.mxu0 %v246
  %v248 = vand.u32 %v17, 4294901760
  %249 = vmatpush.msra.mxu0 %v248
  %v250 = vand.u32 %v16, 4294901760
  %251 = vmatpush.msra.mxu0 %v250
  %v252 = vand.u32 %v15, 4294901760
  %253 = vmatpush.msra.mxu0 %v252
  %v254 = vand.u32 %v14, 4294901760
  %255 = vmatpush.msra.mxu0 %v254
  %v256 = vand.u32 %v13, 4294901760
  %257 = vmatpush.msra.mxu0 %v256
  %v258 = vand.u32 %v12, 4294901760
  %259 = vmatpush.msra.mxu0 %v258
  %v260 = vand.u32 %v22, 4294901760
  %261 = vmatmul.f32.gmra.mxu0 %v260
  %v262 = vpop.f32.mrf.mxu0
  %v263 = vadd.f32 %v234, %v262
  %264 = vdwg.mxu0
  %265 = vst [vmem:[%s2] sm:$0xff] %v263
  // Predicated region
  $region10: #{nets_forward.1} parent=0 // pred_check
    _
  $region11: #{nets_forward.1} parent=0 // pred_check_branch
    %267 = sbr.rel (0) target = $region13
  $region12: #{nets_forward.1} parent=0 // pred_region
    _
  $region13: #{nets_forward.1} parent=0 // pred_fallthru
    _
  // Predicated region
  $region14: #{nets_forward.1} parent=0 // pred_check
    _
  $region15: #{nets_forward.1} parent=0 // pred_check_branch
    %269 = sbr.rel (0) target = $region17
  $region16: #{nets_forward.1} parent=0 // pred_region
    _
  $region17: #{nets_forward.1} parent=0 // pred_fallthru
    _

</llo_original>
